<compile_context>
chip_gen: v5e
topology: v5e:2x2
jax: 0.10.0
libtpu: 0.0.40
codegen_flags: <defaults>
</compile_context>

<pallas_src>
import functools

import jax
import jax.numpy as jnp
from jax.experimental import pallas as pl
from jax.experimental.pallas import tpu as pltpu


# ----------------------------------------------------------------------------
# generation-aware scoped-VMEM budget (v5e/v6e: 128 MiB, v7x: 64 MiB per TC)
# ----------------------------------------------------------------------------
def _vmem_limit_bytes():
    try:
        cap = getattr(pltpu.get_tpu_info(), "vmem_capacity_bytes", None)
        if cap:
            return int(cap * 0.6)
    except Exception:
        pass
    return 32 * 1024 * 1024


VMEM_LIMIT = _vmem_limit_bytes()


def _cparams(sem):
    return pltpu.CompilerParams(dimension_semantics=sem,
                                vmem_limit_bytes=VMEM_LIMIT)


# ----------------------------------------------------------------------------
# padding / tile planning (realistic GEARS sizes, e.g. ng=5045, do not divide
# nice tiles -> pad once up front, mask the padded tail inside the kernels)
# ----------------------------------------------------------------------------
def _round_up(n, m):
    return ((n + m - 1) // m) * m


def _dim_plan(n):
    """(padded size, tile) for a dimension used both as rows and as lanes."""
    if n <= 512:
        n_pad = _round_up(max(n, 8), 8)
        return n_pad, n_pad                 # single full-extent tile (layout-exempt)
    return _round_up(n, 512), 512


def _row_plan(n):
    """(row tile, padded row count) for a flat row dimension."""
    for p in (4096, 2048, 1024, 512, 256, 128, 64, 32, 16, 8):
        if n >= p and n % p == 0:
            return p, n
    if n <= 512:
        n_pad = _round_up(max(n, 8), 8)
        return n_pad, n_pad
    return 512, _round_up(n, 512)


# ----------------------------------------------------------------------------
# kernel 1: y = [relu([BN affine] x) [+ a*aux]] @ W + b   (+ BN partial stats)
# ----------------------------------------------------------------------------
def _fused_linear_kernel(*refs, in_bn, in_relu, has_aux, aux_coeff, tm,
                         mask_rows, want_stats):
    refs = list(refs)
    x_ref = refs.pop(0)
    scale_ref = shift_ref = aux_ref = None
    if in_bn:
        scale_ref = refs.pop(0)
        shift_ref = refs.pop(0)
    if has_aux:
        aux_ref = refs.pop(0)
    w_ref = refs.pop(0)
    b_ref = refs.pop(0)
    y_ref = refs.pop(0)
    stats_ref = refs.pop(0) if want_stats else None

    if in_bn or in_relu or has_aux:
        x = x_ref[...].astype(jnp.float32)
        if in_bn:
            x = x * scale_ref[...] + shift_ref[...]
        if in_relu:
            x = jnp.maximum(x, 0.0)
        if has_aux:
            x = x + aux_coeff * aux_ref[...].astype(jnp.float32)
        xm = x.astype(jnp.bfloat16)
    else:
        xm = x_ref[...].astype(jnp.bfloat16)

    y = jnp.dot(xm, w_ref[...], preferred_element_type=jnp.float32) + b_ref[...]
    if mask_rows is not None:
        row = pl.program_id(0) * tm + jax.lax.broadcasted_iota(jnp.int32, (tm, 1), 0)
        y = jnp.where(row < mask_rows, y, 0.0)
    y_ref[...] = y.astype(y_ref.dtype)
    if want_stats:
        s = jnp.sum(y, axis=0)
        sq = jnp.sum(y * y, axis=0)
        stats_ref[...] = jnp.concatenate([s[None], sq[None]], axis=0)[None]


def fused_linear(x, w_bf16, b, *, rows_valid=None, in_scale=None, in_shift=None,
                 in_relu=False, aux=None, aux_coeff=1.0,
                 out_dtype=jnp.bfloat16, want_stats=True):
    n, din = x.shape
    dout = w_bf16.shape[1]
    if rows_valid is None:
        rows_valid = n
    tm, n_pad = _row_plan(n)
    if n_pad != n:
        x = jnp.pad(x, ((0, n_pad - n), (0, 0)))
        if aux is not None:
            aux = jnp.pad(aux, ((0, n_pad - n), (0, 0)))
    nt = n_pad // tm
    in_bn = in_scale is not None
    has_aux = aux is not None
    mask_rows = rows_valid if n_pad > rows_valid else None

    inputs = [x]
    in_specs = [pl.BlockSpec((tm, din), lambda i: (i, 0))]
    if in_bn:
        inputs += [in_scale.reshape(1, din).astype(jnp.float32),
                   in_shift.reshape(1, din).astype(jnp.float32)]
        in_specs += [pl.BlockSpec((1, din), lambda i: (0, 0)),
                     pl.BlockSpec((1, din), lambda i: (0, 0))]
    if has_aux:
        inputs += [aux]
        in_specs += [pl.BlockSpec((tm, din), lambda i: (i, 0))]
    inputs += [w_bf16, b.reshape(1, dout).astype(jnp.float32)]
    in_specs += [pl.BlockSpec((din, dout), lambda i: (0, 0)),
                 pl.BlockSpec((1, dout), lambda i: (0, 0))]

    kernel = functools.partial(_fused_linear_kernel, in_bn=in_bn,
                               in_relu=in_relu, has_aux=has_aux,
                               aux_coeff=aux_coeff, tm=tm,
                               mask_rows=mask_rows, want_stats=want_stats)
    if want_stats:
        out_shape = (jax.ShapeDtypeStruct((n_pad, dout), out_dtype),
                     jax.ShapeDtypeStruct((nt, 2, dout), jnp.float32))
        out_specs = (pl.BlockSpec((tm, dout), lambda i: (i, 0)),
                     pl.BlockSpec((1, 2, dout), lambda i: (i, 0, 0)))
    else:
        out_shape = jax.ShapeDtypeStruct((n_pad, dout), out_dtype)
        out_specs = pl.BlockSpec((tm, dout), lambda i: (i, 0))

    out = pl.pallas_call(
        kernel, out_shape=out_shape, grid=(nt,),
        in_specs=in_specs, out_specs=out_specs,
        compiler_params=_cparams(("parallel",)),
    )(*inputs)
    if want_stats:
        y, stats = out
    else:
        y, stats = out, None
    if n_pad != n:
        y = y[:n]
    return y, stats


# ----------------------------------------------------------------------------
# kernel 2: recovery_w layer 1 with the per-graph expansion fused in:
#   row (g, i): relu(S * y2[i] + T[g]) @ W + b   (no (G, ng, h) tensor in HBM)
# ----------------------------------------------------------------------------
def _expand_linear_kernel(y2_ref, s_ref, tg_ref, w_ref, b_ref, y_ref, stats_ref,
                          *, tm, mask_rows):
    x = y2_ref[...].astype(jnp.float32) * s_ref[...] + tg_ref[0]
    x = jnp.maximum(x, 0.0)
    y = jnp.dot(x.astype(jnp.bfloat16), w_ref[...],
                preferred_element_type=jnp.float32) + b_ref[...]
    if mask_rows is not None:
        row = pl.program_id(0) * tm + jax.lax.broadcasted_iota(jnp.int32, (tm, 1), 0)
        y = jnp.where(row < mask_rows, y, 0.0)
    y_ref[...] = y.astype(y_ref.dtype)
    s = jnp.sum(y, axis=0)
    sq = jnp.sum(y * y, axis=0)
    stats_ref[...] = jnp.concatenate([s[None], sq[None]], axis=0)[None]


def expand_linear(y2, s_vec, t_mat, w_bf16, b, *, ng_valid,
                  out_dtype=jnp.bfloat16):
    ngp, h = y2.shape
    num_g = t_mat.shape[0]
    dout = w_bf16.shape[1]
    tm, _ = _row_plan(ngp)                 # ngp is already a tile multiple
    nt = ngp // tm
    mask_rows = ng_valid if ngp > ng_valid else None
    kernel = functools.partial(_expand_linear_kernel, tm=tm, mask_rows=mask_rows)
    return pl.pallas_call(
        kernel,
        out_shape=(jax.ShapeDtypeStruct((num_g * ngp, dout), out_dtype),
                   jax.ShapeDtypeStruct((num_g * nt, 2, dout), jnp.float32)),
        grid=(nt, num_g),
        in_specs=[pl.BlockSpec((tm, h), lambda i, g: (i, 0)),      # y2 broadcast over g
                  pl.BlockSpec((1, h), lambda i, g: (0, 0)),
                  pl.BlockSpec((1, 1, h), lambda i, g: (g, 0, 0)),
                  pl.BlockSpec((h, dout), lambda i, g: (0, 0)),
                  pl.BlockSpec((1, dout), lambda i, g: (0, 0))],
        out_specs=(pl.BlockSpec((tm, dout), lambda i, g: (g * nt + i, 0)),
                   pl.BlockSpec((1, 2, dout), lambda i, g: (g * nt + i, 0, 0))),
        compiler_params=_cparams(("parallel", "parallel")),
    )(y2, s_vec.reshape(1, h).astype(jnp.float32),
      t_mat.reshape(num_g, 1, h).astype(jnp.float32),
      w_bf16, b.reshape(1, dout).astype(jnp.float32))


# ----------------------------------------------------------------------------
# kernel 3: SGConv propagate  y = A_norm @ z + b  (z kept VMEM-resident)
# ----------------------------------------------------------------------------
def _adj_matmul_kernel(a_ref, z_ref, b_ref, o_ref, acc_ref, *, tk):
    k = pl.program_id(1)

    @pl.when(k == 0)
    def _():
        acc_ref[...] = jnp.zeros_like(acc_ref)

    off = pl.multiple_of(k * tk, tk)
    acc_ref[...] += jnp.dot(a_ref[...], z_ref[pl.ds(off, tk), :],
                            preferred_element_type=jnp.float32)

    @pl.when(k == pl.num_programs(1) - 1)
    def _():
        o_ref[...] = (acc_ref[...] + b_ref[...]).astype(o_ref.dtype)


def adj_propagate(adj_bf16, z_bf16, b, *, out_dtype=jnp.bfloat16):
    n = adj_bf16.shape[0]
    d = z_bf16.shape[1]
    tm = tk = n if n <= 1024 else 512
    kernel = functools.partial(_adj_matmul_kernel, tk=tk)
    return pl.pallas_call(
        kernel,
        out_shape=jax.ShapeDtypeStruct((n, d), out_dtype),
        grid=(n // tm, n // tk),
        in_specs=[pl.BlockSpec((tm, tk), lambda i, k: (i, k)),
                  pl.BlockSpec((n, d), lambda i, k: (0, 0)),       # whole z in VMEM
                  pl.BlockSpec((1, d), lambda i, k: (0, 0))],
        out_specs=pl.BlockSpec((tm, d), lambda i, k: (i, 0)),
        scratch_shapes=[pltpu.VMEM((tm, d), jnp.float32)],
        compiler_params=_cparams(("parallel", "arbitrary")),
    )(adj_bf16, z_bf16, b.reshape(1, d).astype(jnp.float32))


# ----------------------------------------------------------------------------
# kernel 4: gene-specific decoder #1 (recovery final BN fused)
#   w1out[g, i] = sum_h bn_r(rec[g, i, h]) * indv_w1[i, h] + indv_b1[i]
# ----------------------------------------------------------------------------
def _indv_dot_kernel(rec_ref, sc_ref, sh_ref, w1_ref, b1_ref, o_ref):
    rec = rec_ref[...].astype(jnp.float32) * sc_ref[...] + sh_ref[...]
    o_ref[...] = jnp.sum(rec * w1_ref[...][None, :, :], axis=-1) + b1_ref[...]


def indv_dot(rec3, scale_r, shift_r, w1, b1, *, lane_tile):
    g, ngp, h = rec3.shape
    tn = lane_tile
    # v7x VMEM guard: keep the (g, tn, h) input block <= ~8 MiB per buffer.
    while tn > 128 and g * tn * h * rec3.dtype.itemsize > (8 << 20):
        tn //= 2
    return pl.pallas_call(
        _indv_dot_kernel,
        out_shape=jax.ShapeDtypeStruct((g, ngp), jnp.float32),
        grid=(ngp // tn,),
        in_specs=[pl.BlockSpec((g, tn, h), lambda j: (0, j, 0)),
                  pl.BlockSpec((1, h), lambda j: (0, 0)),
                  pl.BlockSpec((1, h), lambda j: (0, 0)),
                  pl.BlockSpec((tn, h), lambda j: (j, 0)),
                  pl.BlockSpec((1, tn), lambda j: (0, j))],
        out_specs=pl.BlockSpec((g, tn), lambda j: (0, j)),
        compiler_params=_cparams(("parallel",)),
    )(rec3, scale_r.reshape(1, h).astype(jnp.float32),
      shift_r.reshape(1, h).astype(jnp.float32), w1, b1.reshape(1, ngp))


# ----------------------------------------------------------------------------
# kernel 5: final decoder  out = w1out*w2[:,0] + bn_c(cross) @ w2[:,1:]^T + b2 + x
# ----------------------------------------------------------------------------
def _final_decoder_kernel(w1o_ref, cr_ref, sc_ref, sh_ref, w20_ref, w2rt_ref,
                          b2_ref, x_ref, o_ref):
    cross = cr_ref[...].astype(jnp.float32) * sc_ref[...] + sh_ref[...]
    cg = jnp.dot(cross.astype(jnp.bfloat16), w2rt_ref[...],
                 preferred_element_type=jnp.float32)
    o_ref[...] = w1o_ref[...] * w20_ref[...] + cg + b2_ref[...] + x_ref[...]


def final_decoder(w1out, cross_pre, scale_c, shift_c, w2col0, w2rest_t_bf16,
                  b2, x_res, *, lane_tile):
    g, ngp = w1out.shape
    h = cross_pre.shape[1]
    tn = lane_tile
    return pl.pallas_call(
        _final_decoder_kernel,
        out_shape=jax.ShapeDtypeStruct((g, ngp), jnp.float32),
        grid=(ngp // tn,),
        in_specs=[pl.BlockSpec((g, tn), lambda j: (0, j)),
                  pl.BlockSpec((g, h), lambda j: (0, 0)),
                  pl.BlockSpec((1, h), lambda j: (0, 0)),
                  pl.BlockSpec((1, h), lambda j: (0, 0)),
                  pl.BlockSpec((1, tn), lambda j: (0, j)),
                  pl.BlockSpec((h, tn), lambda j: (0, j)),
                  pl.BlockSpec((1, tn), lambda j: (0, j)),
                  pl.BlockSpec((g, tn), lambda j: (0, j))],
        out_specs=pl.BlockSpec((g, tn), lambda j: (0, j)),
        compiler_params=_cparams(("parallel",)),
    )(w1out, cross_pre, scale_c.reshape(1, h).astype(jnp.float32),
      shift_c.reshape(1, h).astype(jnp.float32),
      w2col0.reshape(1, ngp), w2rest_t_bf16, b2.reshape(1, ngp), x_res)


# ----------------------------------------------------------------------------
# BN glue (tiny, plain JAX)
# ----------------------------------------------------------------------------
def reduce_stats(stats):
    d = stats.shape[-1]
    st = stats.reshape(-1, 2, d).astype(jnp.float32)
    return jnp.sum(st[:, 0, :], axis=0), jnp.sum(st[:, 1, :], axis=0)


def bn_affine(s, sq, n_rows, gamma, beta, eps=1e-5):
    mean = s / n_rows
    var = jnp.maximum(sq / n_rows - mean * mean, 0.0)
    inv = jax.lax.rsqrt(var + eps)
    scale = gamma * inv
    return scale, beta - mean * scale


def mlp_forward(x, layers, *, rows_valid=None, in_scale=None, in_shift=None,
                in_relu=False, aux=None, aux_coeff=1.0):
    """GEARS MLP ([Linear, BN, ReLU]*k, trailing ReLU stripped).  The final BN
    is NOT applied; its affine and raw (sum, sum^2) are returned so the caller
    can fuse it into the consumer."""
    if rows_valid is None:
        rows_valid = x.shape[0]
    scale, shift, relu = in_scale, in_shift, in_relu
    s = sq = None
    for li, (w, b, gamma, beta) in enumerate(layers):
        y, stats = fused_linear(x, w, b, rows_valid=rows_valid,
                                in_scale=scale, in_shift=shift, in_relu=relu,
                                aux=aux if li == 0 else None,
                                aux_coeff=aux_coeff)
        s, sq = reduce_stats(stats)
        scale, shift = bn_affine(s, sq, rows_valid, gamma, beta)
        x, relu = y, True
    return x, scale, shift, s, sq


def renorm_max1(table):
    """nn.Embedding(max_norm=True): rows with L2 norm > 1 rescaled to norm 1."""
    norm = jnp.sqrt(jnp.sum(table * table, axis=1, keepdims=True))
    scale = jnp.where(norm > 1.0, 1.0 / (norm + 1e-7), 1.0)
    return table * scale


# ----------------------------------------------------------------------------
# one-time parameter preprocessing (padding + bf16 casts, off the hot path)
# ----------------------------------------------------------------------------
def _pad_rows(a, n_to):
    pad = [(0, n_to - a.shape[0])] + [(0, 0)] * (a.ndim - 1)
    return jnp.pad(a, pad)


def _pad_square(a, n_to):
    return jnp.pad(a, ((0, n_to - a.shape[0]), (0, n_to - a.shape[1])))


def prepare_params(params, adj_gene, adj_go, adj_bio, ng, npt, h):
    bf16, f32 = jnp.bfloat16, jnp.float32
    ng_pad, ng_tile = _dim_plan(ng)
    np_pad, _ = _dim_plan(npt)

    def prep_mlp(layers, pad_din_to=None):
        out = []
        for li, (w, b, gamma, beta) in enumerate(layers):
            if li == 0 and pad_din_to is not None:
                w = _pad_rows(w, pad_din_to)
            out.append((w.astype(bf16), b.astype(f32), gamma, beta))
        return out

    gene_tab = renorm_max1(params["gene_emb"])
    pos_tab = renorm_max1(params["emb_pos"])
    go_tab = renorm_max1(params["pert_emb_go"])
    bio_tab = renorm_max1(params["pert_emb_bio"])
    w2 = params["indv_w2"]

    return {
        "ng": ng, "ng_pad": ng_pad, "ng_tile": ng_tile,
        "npt": npt, "np_pad": np_pad, "h": h,
        "gene_tab": gene_tab,
        "gene_tab_pad": _pad_rows(gene_tab, ng_pad),
        "pos_tab_pad": _pad_rows(pos_tab, ng_pad).astype(bf16),
        "go_tab_pad": _pad_rows(go_tab, np_pad).astype(bf16),
        "bio_tab_pad": _pad_rows(bio_tab, np_pad).astype(bf16),
        "adj_gene": _pad_square(adj_gene, ng_pad).astype(bf16),
        "adj_go": _pad_square(adj_go, np_pad).astype(bf16),
        "adj_bio": _pad_square(adj_bio, np_pad).astype(bf16),
        "bn_emb": params["bn_emb"],
        "bn_pert_base": params["bn_pert_base"],
        "sgc_pos": (params["sgc_pos"][0].astype(bf16), params["sgc_pos"][1]),
        "sgc_go": (params["sgc_go"][0].astype(bf16), params["sgc_go"][1]),
        "sgc_bio": (params["sgc_bio"][0].astype(bf16), params["sgc_bio"][1]),
        "pert_comb": prep_mlp(params["pert_comb"]),
        "emb_trans_v2": prep_mlp(params["emb_trans_v2"]),
        "pert_fuse": prep_mlp(params["pert_fuse"]),
        "recovery_w": prep_mlp(params["recovery_w"]),
        "cross_gene_state": prep_mlp(params["cross_gene_state"], pad_din_to=ng_pad),
        "indv_w1": _pad_rows(params["indv_w1"], ng_pad),
        "indv_b1": _pad_rows(params["indv_b1"], ng_pad),
        "indv_w2_col0": _pad_rows(w2[:, 0], ng_pad),
        "indv_w2_rest_t": jnp.transpose(_pad_rows(w2[:, 1:], ng_pad)).astype(bf16),
        "indv_b2": _pad_rows(params["indv_b2"], ng_pad),
    }


# ----------------------------------------------------------------------------
# GEARS forward pass
# ----------------------------------------------------------------------------
def gears_forward(pp, x, pert_idx, num_graphs):
    f32, bf16 = jnp.float32, jnp.bfloat16
    G = num_graphs
    ng, ng_pad, ng_tile = pp["ng"], pp["ng_pad"], pp["ng_tile"]
    npt, np_pad, h = pp["npt"], pp["np_pad"], pp["h"]
    zeros_h = jnp.zeros((h,), f32)

    # ---- gene branch (identical for every graph -> computed once at (ng_pad, h))
    gene_tab = pp["gene_tab"]
    g_e, b_e = pp["bn_emb"]
    mean_e = jnp.mean(gene_tab, axis=0)                       # bn_emb batch stats (plain JAX)
    var_e = jnp.maximum(jnp.mean(gene_tab * gene_tab, axis=0) - mean_e ** 2, 0.0)
    scale_e = g_e * jax.lax.rsqrt(var_e + 1e-5)
    shift_e = b_e - mean_e * scale_e

    # SGConv(K=1) on the co-expression graph: A_norm @ (x W) + b
    w_pos, b_pos = pp["sgc_pos"]
    z_pos, _ = fused_linear(pp["pos_tab_pad"], w_pos, zeros_h,
                            rows_valid=ng, want_stats=False)
    pos_out = adj_propagate(pp["adj_gene"], z_pos, b_pos)     # (ng_pad, h) bf16

    # emb_trans_v2; relu(bn_emb(emb)) + 0.2*pos_out fused into its first layer
    y2, scale2, shift2, s_y2, sq_y2 = mlp_forward(
        pp["gene_tab_pad"], pp["emb_trans_v2"], rows_valid=ng,
        in_scale=scale_e, in_shift=shift_e, in_relu=True,
        aux=pos_out, aux_coeff=0.2)                           # y2 pre-final-BN, bf16

    # ---- perturbation branch (GO + BioGRID GNNs, combined MLP)
    w_go, b_go = pp["sgc_go"]
    w_bio, b_bio = pp["sgc_bio"]
    z_go, _ = fused_linear(pp["go_tab_pad"], w_go, zeros_h,
                           rows_valid=npt, want_stats=False)
    z_bio, _ = fused_linear(pp["bio_tab_pad"], w_bio, zeros_h,
                            rows_valid=npt, want_stats=False)
    go_out = adj_propagate(pp["adj_go"], z_go, b_go)
    bio_out = adj_propagate(pp["adj_bio"], z_bio, b_bio)
    pert_y, scale_p, shift_p, _, _ = mlp_forward(
        go_out, pp["pert_comb"], rows_valid=npt, aux=bio_out, aux_coeff=1.0)

    # per-graph perturbation sums: pert_comb final BN folded into the tiny
    # selection matmul (plain JAX; the grouping itself is host-side Python)
    add = jnp.zeros((G, h), f32)
    track = {}
    for g, plist in enumerate(pert_idx):
        for p in plist:
            if p != -1:
                track.setdefault(g, []).append(p)
    if track:
        graphs = list(track.keys())
        sel_rows = []
        for g in graphs:
            row = [0.0] * np_pad
            for p in track[g]:
                row[p] += 1.0
            sel_rows.append(row)
        sel = jnp.asarray(sel_rows, dtype=f32)                # (n_trk, np_pad)
        counts = jnp.sum(sel, axis=1, keepdims=True)
        pert_sums = (sel @ pert_y.astype(f32)) * scale_p + counts * shift_p
        if len(graphs) == 1:   # GEARS duplicates a lone row so BN sees 2 samples
            pert_sums = jnp.concatenate([pert_sums, pert_sums], axis=0)
        fuse_y, fuse_s, fuse_sh, _, _ = mlp_forward(pert_sums, pp["pert_fuse"])
        emb_total = fuse_y.astype(f32) * fuse_s + fuse_sh
        for i, g in enumerate(graphs):
            add = add.at[g].set(emb_total[i])

    # ---- bn_pert_base batch statistics, analytically (no (G, ng, h) tensor):
    #      a_i = bn2(y2_i), c_g = add[g];  stats over all (g, i) pairs.
    g_pb, b_pb = pp["bn_pert_base"]
    sum_a = scale2 * s_y2 + ng * shift2
    sumsq_a = scale2 ** 2 * sq_y2 + 2.0 * scale2 * shift2 * s_y2 + ng * shift2 ** 2
    sum_c = jnp.sum(add, axis=0)
    sumsq_c = jnp.sum(add * add, axis=0)
    tot_s = G * sum_a + ng * sum_c
    tot_sq = G * sumsq_a + 2.0 * sum_a * sum_c + ng * sumsq_c
    scale_pb, shift_pb = bn_affine(tot_s, tot_sq, G * ng, g_pb, b_pb)

    # ---- recovery_w layer 1 with the per-graph expansion fused in:
    #      relu(scale_pb*(bn2(y2_i) + add_g) + shift_pb) = relu(S*y2_i + T_g)
    S = scale_pb * scale2
    T = scale_pb[None, :] * (shift2[None, :] + add) + shift_pb[None, :]
    w_r1, b_r1, gam_r1, bet_r1 = pp["recovery_w"][0]
    r1, stats_r1 = expand_linear(y2, S, T, w_r1, b_r1, ng_valid=ng)   # (G*ng_pad, 2h) bf16
    s_r1, sq_r1 = reduce_stats(stats_r1)
    scale_r1, shift_r1 = bn_affine(s_r1, sq_r1, G * ng, gam_r1, bet_r1)

    # recovery_w layer 2; padded gene rows are a constant (zero input), so
    # their contribution to the BN statistics is removed analytically.
    w_r2, b_r2, gam_r2, bet_r2 = pp["recovery_w"][1]
    rec_pre, stats_r2 = fused_linear(r1, w_r2, b_r2, in_scale=scale_r1,
                                     in_shift=shift_r1, in_relu=True)
    s_r2, sq_r2 = reduce_stats(stats_r2)
    n_pad_rows = G * (ng_pad - ng)
    if n_pad_rows > 0:
        pad_in = jnp.maximum(shift_r1, 0.0).astype(bf16)
        y_pad = jnp.dot(pad_in, w_r2, preferred_element_type=f32) + b_r2
        s_r2 = s_r2 - n_pad_rows * y_pad
        sq_r2 = sq_r2 - n_pad_rows * (y_pad * y_pad)
    scale_r, shift_r = bn_affine(s_r2, sq_r2, G * ng, gam_r2, bet_r2)
    rec3 = rec_pre.reshape(G, ng_pad, h)

    # ---- gene-specific decoder #1 (recovery final BN fused)
    w1out = indv_dot(rec3, scale_r, shift_r, pp["indv_w1"], pp["indv_b1"],
                     lane_tile=ng_tile)

    # ---- cross-gene state MLP (final BN fused into the decoder)
    cross_pre, scale_c, shift_c, _, _ = mlp_forward(w1out, pp["cross_gene_state"])

    # ---- gene-specific decoder #2 + residual x
    x_res = jnp.pad(x.reshape(G, ng).astype(f32), ((0, 0), (0, ng_pad - ng)))
    out = final_decoder(w1out, cross_pre, scale_c, shift_c,
                        pp["indv_w2_col0"], pp["indv_w2_rest_t"],
                        pp["indv_b2"], x_res, lane_tile=ng_tile)
    return out[:, :ng]                                        # (G, num_genes)


# ----------------------------------------------------------------------------
# parameter / adjacency initialization (self-contained test harness)
# ----------------------------------------------------------------------------
def make_norm_adj(key, n):
    """Dense symmetrically-normalized adjacency with self loops (gcn_norm)."""
    a = jax.random.uniform(key, (n, n), jnp.float32)
    a = (a + a.T) * 0.5
    a = jnp.where(a > 0.7, a, 0.0)
    a = a + jnp.eye(n, dtype=jnp.float32)
    deg = jnp.sum(a, axis=1)
    dinv = jax.lax.rsqrt(deg)
    return a * dinv[:, None] * dinv[None, :]


def init_linear(key, din, dout, scale=0.1):
    kw, kb = jax.random.split(key)
    w = jax.random.normal(kw, (din, dout), jnp.float32) * scale
    b = jax.random.normal(kb, (dout,), jnp.float32) * 0.01
    return w, b


def init_mlp(key, sizes):
    keys = jax.random.split(key, len(sizes) - 1)
    layers = []
    for i in range(len(sizes) - 1):
        w, b = init_linear(keys[i], sizes[i], sizes[i + 1])
        layers.append((w, b, jnp.ones((sizes[i + 1],), jnp.float32),
                       jnp.zeros((sizes[i + 1],), jnp.float32)))
    return layers


def init_params(key, ng, npt, h):
    ks = jax.random.split(key, 16)
    p = {}
    p["gene_emb"] = jax.random.normal(ks[0], (ng, h), jnp.float32) * 0.1
    p["emb_pos"] = jax.random.normal(ks[1], (ng, h), jnp.float32) * 0.1
    p["pert_emb_go"] = jax.random.normal(ks[2], (npt, h), jnp.float32) * 0.1
    p["pert_emb_bio"] = jax.random.normal(ks[3], (npt, h), jnp.float32) * 0.1
    p["bn_emb"] = (jnp.ones((h,), jnp.float32), jnp.zeros((h,), jnp.float32))
    p["bn_pert_base"] = (jnp.ones((h,), jnp.float32), jnp.zeros((h,), jnp.float32))
    p["sgc_pos"] = init_linear(ks[4], h, h)      # num_gene_gnn_layers = 1
    p["sgc_go"] = init_linear(ks[5], h, h)       # num_go_gnn_layers = 1
    p["sgc_bio"] = init_linear(ks[6], h, h)
    p["pert_comb"] = init_mlp(ks[7], [h, h, h])
    p["emb_trans_v2"] = init_mlp(ks[8], [h, h, h])
    p["pert_fuse"] = init_mlp(ks[9], [h, h, h])
    p["recovery_w"] = init_mlp(ks[10], [h, 2 * h, h])
    p["cross_gene_state"] = init_mlp(ks[11], [ng, h, h])
    p["indv_w1"] = jax.random.normal(ks[12], (ng, h), jnp.float32) * 0.1      # (ng, h, 1) squeezed
    p["indv_b1"] = jax.random.normal(ks[13], (ng,), jnp.float32) * 0.1        # (ng, 1) squeezed
    p["indv_w2"] = jax.random.normal(ks[14], (ng, h + 1), jnp.float32) * 0.1  # (1, ng, h+1) squeezed
    p["indv_b2"] = jax.random.normal(ks[15], (ng,), jnp.float32) * 0.1        # (1, ng) squeezed
    return p


# ----------------------------------------------------------------------------
if __name__ == "__main__":
    # Small shapes chosen so the gene/pert padding + row-masking paths are
    # exercised (20 genes -> padded to 24; 10 perts -> padded to 16).
    NUM_GENES, NUM_PERTS, HIDDEN, NUM_GRAPHS = 20, 10, 32, 2

    key = jax.random.PRNGKey(0)
    kp, kx, ka1, ka2, ka3 = jax.random.split(key, 5)

    params = init_params(kp, NUM_GENES, NUM_PERTS, HIDDEN)
    x = jax.random.normal(kx, (NUM_GRAPHS * NUM_GENES, 1), jnp.float32)  # data.x
    pert_idx = [[1, -1], [3, 5]]                                         # data.pert_idx

    adj_gene = make_norm_adj(ka1, NUM_GENES)   # shared co-expression graph (no kron)
    adj_go = make_norm_adj(ka2, NUM_PERTS)
    adj_bio = make_norm_adj(ka3, NUM_PERTS)

    pp = prepare_params(params, adj_gene, adj_go, adj_bio,
                        NUM_GENES, NUM_PERTS, HIDDEN)
    out = gears_forward(pp, x, pert_idx, NUM_GRAPHS)
    out = jax.block_until_ready(out)
    assert out.shape == (NUM_GRAPHS, NUM_GENES)
    assert bool(jnp.all(jnp.isfinite(out)))
    print("KERNEL_OK")
</pallas_src>

<mosaic_0001>
module attributes {stable_mosaic.version = 11 : i64} {
  func.func @_fused_linear_kernel(%arg0: i32, %arg1: memref<8x32xbf16, #tpu.memory_space<vmem>>, %arg2: memref<32x32xbf16, #tpu.memory_space<vmem>>, %arg3: memref<1x32xf32, #tpu.memory_space<vmem>>, %arg4: memref<8x32xbf16, #tpu.memory_space<vmem>>) attributes {dimension_semantics = [#tpu.dimension_semantics<parallel>], iteration_bounds = array<i64: 3>, scalar_prefetch = 0 : i64, scratch_operands = 0 : i64, tpu.core_type = #tpu.core_type<tc>, window_params = [{transform_indices = @transform_0, window_bounds = array<i64: 8, 32>}, {pipeline_mode = #tpu.pipeline_mode<synchronous>, transform_indices = @transform_1, window_bounds = array<i64: 32, 32>}, {pipeline_mode = #tpu.pipeline_mode<synchronous>, transform_indices = @transform_2, window_bounds = array<i64: 1, 32>}, {transform_indices = @transform_3, window_bounds = array<i64: 8, 32>}]} {
    %c0 = arith.constant 0 : index
    %c0_0 = arith.constant 0 : index
    %0 = vector.load %arg1[%c0, %c0_0] : memref<8x32xbf16, #tpu.memory_space<vmem>>, vector<8x32xbf16>
    %c0_1 = arith.constant 0 : index
    %c0_2 = arith.constant 0 : index
    %1 = vector.load %arg2[%c0_1, %c0_2] : memref<32x32xbf16, #tpu.memory_space<vmem>>, vector<32x32xbf16>
    %cst = arith.constant dense<0.000000e+00> : vector<8x32xf32>
    %2 = tpu.matmul %0, %1, %cst {dimension_numbers = #tpu.dot_dimension_numbers<[1], [0], [0], [1], [0, 0, 1, 1], [], []>} : vector<8x32xbf16>, vector<32x32xbf16>, vector<8x32xf32> -> vector<8x32xf32>
    %c0_3 = arith.constant 0 : index
    %c0_4 = arith.constant 0 : index
    %3 = vector.load %arg3[%c0_3, %c0_4] : memref<1x32xf32, #tpu.memory_space<vmem>>, vector<1x32xf32>
    %4 = vector.broadcast %3 : vector<1x32xf32> to vector<8x32xf32>
    %5 = arith.addf %2, %4 : vector<8x32xf32>
    %c8_i32 = arith.constant 8 : i32
    %6 = arith.muli %arg0, %c8_i32 : i32
    %7 = tpu.iota {dimensions = array<i32: 0>} : vector<8x1xi32>
    %8 = vector.broadcast %6 : i32 to vector<8x1xi32>
    %9 = arith.addi %8, %7 : vector<8x1xi32>
    %c20_i32 = arith.constant 20 : i32
    %10 = vector.broadcast %c20_i32 : i32 to vector<8x1xi32>
    %11 = arith.cmpi slt, %9, %10 : vector<8x1xi32>
    %cst_5 = arith.constant 0.000000e+00 : f32
    %12 = vector.shape_cast %11 : vector<8x1xi1> to vector<8x1xi1>
    %13 = vector.broadcast %12 : vector<8x1xi1> to vector<8x32xi1>
    %14 = vector.broadcast %cst_5 : f32 to vector<8x32xf32>
    %15 = arith.select %13, %5, %14 : vector<8x32xi1>, vector<8x32xf32>
    %16 = arith.truncf %15 : vector<8x32xf32> to vector<8x32xbf16>
    %c0_6 = arith.constant 0 : index
    %c0_7 = arith.constant 0 : index
    %17 = vector.load %arg4[%c0_6, %c0_7] : memref<8x32xbf16, #tpu.memory_space<vmem>>, vector<8x32xbf16>
    tpu.vector_store %arg4[%c0_6, %c0_7], %16 {strides = array<i32>} : memref<8x32xbf16, #tpu.memory_space<vmem>>, vector<8x32xbf16>,
    return
  }
  func.func @transform_0(%arg0: i32) -> (i32, i32) {
    %c0_i32 = arith.constant 0 : i32
    %c0_i32_0 = arith.constant 0 : i32
    return %arg0, %c0_i32 : i32, i32
  }
  func.func @transform_1(%arg0: i32) -> (i32, i32) {
    %c0_i32 = arith.constant 0 : i32
    %c0_i32_0 = arith.constant 0 : i32
    %c0_i32_1 = arith.constant 0 : i32
    return %c0_i32, %c0_i32_0 : i32, i32
  }
  func.func @transform_2(%arg0: i32) -> (i32, i32) {
    %c0_i32 = arith.constant 0 : i32
    %c0_i32_0 = arith.constant 0 : i32
    %c0_i32_1 = arith.constant 0 : i32
    return %c0_i32, %c0_i32_0 : i32, i32
  }
  func.func @transform_3(%arg0: i32) -> (i32, i32) {
    %c0_i32 = arith.constant 0 : i32
    %c0_i32_0 = arith.constant 0 : i32
    return %arg0, %c0_i32 : i32, i32
  }
}

</mosaic_0001>

<llo_original>
// kernel: tpu_custom_call.1
$region0: #{tpu_custom_call.1}
  #allocation0 [shape = 'u32[]', space=smem, size = 0x4, offset = 0x4, fixed_abs, tag = 'smem constant byte address 0x4 - core index']
  #allocation1 [shape = 'u32[72,128]{1,0:T(1,128)}', space=vmem, size = 0x9000, scoped, tag = 'internal scratch']
  %s0 = inlined_call_operand.hbm [shape: bf16[24,32], index: 0, kind: input, shape index: {}]
  %s1 = inlined_call_operand.hbm [shape: bf16[32,32], index: 1, kind: input, shape index: {}]
  %s2 = inlined_call_operand.vmem [shape: f32[1,32], index: 2, kind: input, shape index: {}]
  %s3 = inlined_call_operand.hbm [shape: bf16[24,32], index: 3, kind: output, shape index: {}]
  %s4 = sld [smem:[#allocation0]]
  $region53: #{tpu_custom_call.1} parent=0
    _
  %s6 = ssub.s32 1, %s4
  %s7 = scalar_select 0, %s6, %s4
  $region1: #{tpu_custom_call.1} parent=0
    #allocation2 [shape = 'u8[4096]{0}', space=vmem, size = 0x1000, scoped, tag = 'input window, operand 0']
    #allocation3 [shape = 's32[2]{0}', space=sflag, size = 0x8, scoped, tag = 'scoped memory for tpu_custom_call.1']
    #allocation4 [shape = 's32[2]{0}', space=sflag, size = 0x8, scoped, tag = 'scoped memory for tpu_custom_call.1']
    #allocation5 [shape = 'u8[8192]{0}', space=vmem, size = 0x2000, scoped, tag = 'input window, operand 1, single buffered']
    #allocation6 [shape = 's32[1]{0}', space=sflag, size = 0x4, scoped, tag = 'scoped memory for tpu_custom_call.1']
    #allocation7 [shape = 'u8[4096]{0}', space=vmem, size = 0x1000, scoped, tag = 'output window, operand 0']
    %8 = vsyncpa [#allocation3], 0
    %s9 = scalar_lea.sflag [#allocation3], 1
    %10 = vsyncpa %s9, 0
    %11 = vsyncpa [#allocation6], 0
    %12 = vsyncpa [#allocation4], 0
    %s13 = scalar_lea.sflag [#allocation4], 1
    %14 = vsyncpa %s13, 0
    loop: start=0, step=1, limit=5
    $region2: #{tpu_custom_call.1} parent=1 // loop_pre_header
      _
    $region3: #{tpu_custom_call.1} parent=1 // loop_header
      %s16 = sphi 0, %s20
      %p17 = scmp.ge.s32.totalorder %s16, 5
      %s26 = sphi 0, %s28
      %s29 = sphi 0, %s26
      %s30 = sphi 0, %s29
      %s46 = sphi 0, %s30
      %s50 = sphi 0, %s50
      %s52 = sphi 0, %s50
      %s53 = sphi 0, %s52
      %s67 = sphi 0, %s53
      %s71 = sphi 0, %s71
      %s73 = sphi 0, %s71
      %s74 = sphi 0, %s73
      %s88 = sphi 0, %s74
      %s94 = sphi 0, %s96
      %s97 = sphi 0, %s94
      %s98 = sphi 0, %s97
      %s114 = sphi 0, %s98
    $region4: #{tpu_custom_call.1} parent=1 // loop_header_branch
      %19 = sbr.rel (%p17) target = $region8
    $region5: #{tpu_custom_call.1} parent=1 // loop_body
      %s21 = ssub.s32 %s16, 1
      %s22 = ssub.s32 %s16, 2
      %s23 = sadd.s32 %s16, 1
      %s24 = ssub.s32 %s16, %s23
      %p25 = scmp.eq.s32.totalorder %s24, 0
      %s27 = sadd.s32 %s26, 1
      %s28 = scalar_select %p25, %s26, %s27
      %p31 = pneg %p25
      %p32 = scmp.eq.s32.totalorder %s16, 2
      %p33 = por %p31, %p32
      %p34 = scmp.ne.s32.totalorder %s26, %s29
      %p35 = scmp.eq.s32.totalorder %s16, 0
      %p36 = por %p34, %p35
      %p37 = scmp.ne.s32.totalorder %s26, %s29
      %p38 = scmp.eq.s32.totalorder %s21, 2
      %p39 = por %p37, %p38
      %p40 = scmp.ne.s32.totalorder %s29, %s30
      %p41 = scmp.eq.s32.totalorder %s21, 0
      %p42 = por %p40, %p41
      %p43 = scmp.ne.s32.totalorder %s29, %s30
      %p44 = scmp.eq.s32.totalorder %s22, 2
      %p45 = por %p43, %p44
      %p47 = scmp.ne.s32.totalorder %s30, %s46
      %p48 = scmp.eq.s32.totalorder %s22, 0
      %p49 = por %p47, %p48
      %s51 = sadd.s32 %s50, 1
      %p54 = scmp.eq.s32.totalorder %s16, 2
      %p55 = scmp.ne.s32.totalorder %s50, %s52
      %p56 = scmp.eq.s32.totalorder %s16, 0
      %p57 = por %p55, %p56
      %p58 = scmp.ne.s32.totalorder %s50, %s52
      %p59 = scmp.eq.s32.totalorder %s21, 2
      %p60 = por %p58, %p59
      %p61 = scmp.ne.s32.totalorder %s52, %s53
      %p62 = scmp.eq.s32.totalorder %s21, 0
      %p63 = por %p61, %p62
      %p64 = scmp.ne.s32.totalorder %s52, %s53
      %p65 = scmp.eq.s32.totalorder %s22, 2
      %p66 = por %p64, %p65
      %p68 = scmp.ne.s32.totalorder %s53, %s67
      %p69 = scmp.eq.s32.totalorder %s22, 0
      %p70 = por %p68, %p69
      %s72 = sadd.s32 %s71, 1
      %p75 = scmp.eq.s32.totalorder %s16, 2
      %p76 = scmp.ne.s32.totalorder %s71, %s73
      %p77 = scmp.eq.s32.totalorder %s16, 0
      %p78 = por %p76, %p77
      %p79 = scmp.ne.s32.totalorder %s71, %s73
      %p80 = scmp.eq.s32.totalorder %s21, 2
      %p81 = por %p79, %p80
      %p82 = scmp.ne.s32.totalorder %s73, %s74
      %p83 = scmp.eq.s32.totalorder %s21, 0
      %p84 = por %p82, %p83
      %p85 = scmp.ne.s32.totalorder %s73, %s74
      %p86 = scmp.eq.s32.totalorder %s22, 2
      %p87 = por %p85, %p86
      %p89 = scmp.ne.s32.totalorder %s74, %s88
      %p90 = scmp.eq.s32.totalorder %s22, 0
      %p91 = por %p89, %p90
      %s92 = ssub.s32 %s16, %s23
      %p93 = scmp.eq.s32.totalorder %s92, 0
      %s95 = sadd.s32 %s94, 1
      %s96 = scalar_select %p93, %s94, %s95
      %p99 = pneg %p93
      %p100 = scmp.eq.s32.totalorder %s16, 2
      %p101 = por %p99, %p100
      %p102 = scmp.ne.s32.totalorder %s94, %s97
      %p103 = scmp.eq.s32.totalorder %s16, 0
      %p104 = por %p102, %p103
      %p105 = scmp.ne.s32.totalorder %s94, %s97
      %p106 = scmp.eq.s32.totalorder %s21, 2
      %p107 = por %p105, %p106
      %p108 = scmp.ne.s32.totalorder %s97, %s98
      %p109 = scmp.eq.s32.totalorder %s21, 0
      %p110 = por %p108, %p109
      %p111 = scmp.ne.s32.totalorder %s97, %s98
      %p112 = scmp.eq.s32.totalorder %s22, 2
      %p113 = por %p111, %p112
      %p115 = scmp.ne.s32.totalorder %s98, %s114
      %p116 = scmp.eq.s32.totalorder %s22, 0
      %p117 = por %p115, %p116
      %p118 = scmp.le.s32.totalorder 1, %s16
      %p119 = scmp.lt.s32.totalorder %s16, 4
      %p120 = pnand %p118, %p119
      %p121 = pneg %p120
      // Predicated region
      $region9: #{tpu_custom_call.1} parent=5 // pred_check
        _
      $region10: #{tpu_custom_call.1} parent=5 // pred_check_branch
        %123 = sbr.rel (%p120) target = $region12
      $region11: #{tpu_custom_call.1} parent=5 // pred_region
        %s124 = ssub.s32 %s16, 1
        // Predicated region
        $region13: #{tpu_custom_call.1} parent=11 // pred_check
          %p125 = pneg %p63
        $region14: #{tpu_custom_call.1} parent=11 // pred_check_branch
          %127 = sbr.rel (%p125) target = $region16
        $region15: #{tpu_custom_call.1} parent=11 // pred_region
          %129 = vsyncadd [#allocation6], 0
          %s130 = sshll.u32 %s1, 4
          %s131 = int_to_ptr.hbm [resolvable:$true] %s130
          %s132 = sshll.u32 [#allocation5], 4
          %s133 = int_to_ptr.vmem [resolvable:$true] %s132
          %138 = dma.hbm_to_vmem [thread:$0]  %s131, 256, %s133, [#allocation6], 64, 64, 4
        $region16: #{tpu_custom_call.1} parent=11 // pred_fallthru
          _
        // Predicated region
        $region17: #{tpu_custom_call.1} parent=11 // pred_check
          %p139 = pneg %p84
        $region18: #{tpu_custom_call.1} parent=11 // pred_check_branch
          %141 = sbr.rel (%p139) target = $region20
        $region19: #{tpu_custom_call.1} parent=11 // pred_region
          _
        $region20: #{tpu_custom_call.1} parent=11 // pred_fallthru
          _
      $region12: #{tpu_custom_call.1} parent=5 // pred_fallthru
        _
      %p142 = scmp.lt.s32.totalorder %s16, 3
      // Predicated region
      $region21: #{tpu_custom_call.1} parent=5 // pred_check
        %p143 = pneg %p142
      $region22: #{tpu_custom_call.1} parent=5 // pred_check_branch
        %145 = sbr.rel (%p143) target = $region24
      $region23: #{tpu_custom_call.1} parent=5 // pred_region
        // Predicated region
        $region25: #{tpu_custom_call.1} parent=23 // pred_check
          %p146 = pneg %p36
        $region26: #{tpu_custom_call.1} parent=23 // pred_check_branch
          %148 = sbr.rel (%p146) target = $region28
        $region27: #{tpu_custom_call.1} parent=23 // pred_region
          %s149 = sand.u32 %s26, 1
          %s150 = scalar_lea.sflag [#allocation3], %s149
          %s151 = sand.u32 %s26, 1
          %s152 = smul.addr %s151, 4
          %s153 = scalar_lea.vmem [#allocation2], %s152
          %155 = vsyncadd %s150, 0
          %s156 = smul.addr %s16, 4
          %s157 = scalar_lea.hbm %s0, %s156
          %s159 = sshll.u32 %s157, 4
          %s160 = int_to_ptr.hbm [resolvable:$true] %s159
          %s161 = sshll.u32 %s153, 4
          %s162 = int_to_ptr.vmem [resolvable:$true] %s161
          %164 = dma.hbm_to_vmem [thread:$0]  %s160, 64, %s162, %s150
        $region28: #{tpu_custom_call.1} parent=23 // pred_fallthru
          _
      $region24: #{tpu_custom_call.1} parent=5 // pred_fallthru
        _
      %p165 = scmp.le.s32.totalorder 1, %s16
      %p166 = scmp.lt.s32.totalorder %s16, 4
      %p167 = pnand %p165, %p166
      %p168 = pneg %p167
      // Predicated region
      $region29: #{tpu_custom_call.1} parent=5 // pred_check
        _
      $region30: #{tpu_custom_call.1} parent=5 // pred_check_branch
        %170 = sbr.rel (%p167) target = $region32
      $region31: #{tpu_custom_call.1} parent=5 // pred_region
        %s171 = ssub.s32 %s16, 1
        %s172 = sand.u32 %s29, 1
        %s173 = scalar_lea.sflag [#allocation3], %s172
        %s174 = sand.u32 %s29, 1
        %s175 = smul.addr %s174, 4
        %s176 = scalar_lea.vmem [#allocation2], %s175
        // Predicated region
        $region33: #{tpu_custom_call.1} parent=31 // pred_check
          %p177 = pneg %p42
        $region34: #{tpu_custom_call.1} parent=31 // pred_check_branch
          %179 = sbr.rel (%p177) target = $region36
        $region35: #{tpu_custom_call.1} parent=31 // pred_region
          %181 = dma.done %s173, 64
        $region36: #{tpu_custom_call.1} parent=31 // pred_fallthru
          _
        // Predicated region
        $region37: #{tpu_custom_call.1} parent=31 // pred_check
          %p182 = pneg %p63
        $region38: #{tpu_custom_call.1} parent=31 // pred_check_branch
          %184 = sbr.rel (%p182) target = $region40
        $region39: #{tpu_custom_call.1} parent=31 // pred_region
          %186 = dma.done [#allocation6], 256
        $region40: #{tpu_custom_call.1} parent=31 // pred_fallthru
          _
        %s187 = sand.u32 %s29, 1
        %s188 = scalar_lea.sflag [#allocation3], %s187
        %s189 = sand.u32 %s29, 1
        %s190 = smul.addr %s189, 4
        %s191 = scalar_lea.vmem [#allocation2], %s190
        %p192 = pneg %p42
        %p193 = pneg %p39
        %p194 = pneg %p63
        %p195 = pneg %p60
        %p196 = pneg %p84
        %p197 = pneg %p81
        %p198 = pneg %p110
        %p199 = pneg %p107
        %s200 = sand.u32 %s97, 1
        %s201 = scalar_lea.sflag [#allocation4], %s200
        %s202 = sand.u32 %s97, 1
        %s203 = smul.addr %s202, 4
        %s204 = scalar_lea.vmem [#allocation7], %s203
        %v206 = vld [vmem:[%s176] sm:$0xf]
        %v207 = vld [vmem:[#allocation5] sm:$0xf]
        %v208 = vld [vmem:[#allocation5 + $0x4] sm:$0xf]
        %v209 = vld [vmem:[#allocation5 + $0x8] sm:$0xf]
        %v210 = vld [vmem:[#allocation5 + $0xc] sm:$0xf]
        %v211 = vld [vmem:[%s2] sm:$0x1]
        %v213 = vperm.slane %v211, 0
        %v219 = vunpack.c.l.b16 %v207
        %v220 = vunpack.c.l.b16 %v208
        %v221 = vunpack.c.l.b16 %v209
        %v222 = vunpack.c.l.b16 %v210
        %v223 = vpack.c.b16 %v220, %v219
        %v224 = vpack.c.b16 %v222, %v221
        %vm227 = vcmask 261120
        %v229 = vsel %vm227, %v206, 0
        %231 = vmatpush.bf16.msra.mxu0 0
        %232 = vmatpush.bf16.msra.mxu0 0
        %233 = vmatpush.bf16.msra.mxu0 0
        %234 = vmatpush.bf16.msra.mxu0 0
        %235 = vmatpush.bf16.msra.mxu0 0
        %236 = vmatpush.bf16.msra.mxu0 0
        %237 = vmatpush.bf16.msra.mxu0 %v224
        %238 = vmatpush.bf16.msra.mxu0 %v223
        %239 = vmatmul.bf16.gmra.mxu0 %v229
        %v240 = vpop.f32.mrf.mxu0
        %v241 = vadd.f32 %v213, %v240
        %v242 = vpop.f32.mrf.mxu0
        %243 = vdwg.mxu0
        %s244 = smul.u32 %s21, 8
        %v245 = vlaneseq
        %v246 = vshrl.u32 %v245, 7
        %v247 = vstv %s244
        %v248 = vadd.s32 %v247, %v246
        %vm249 = vcmp.lt.s32.totalorder %v248, 20
        %v250 = vsel %vm249, 1, 0
        %vm251 = vcmp.eq.s32.totalorder %v250, 1
        %v252 = vsel %vm251, %v241, 0.0
        %v253 = vpack.c.bf16 %v252, %v252
        %vm254 = vcmask 257024
        %255 = vst.msk [vmem:[%s204] sm:$0xf] %vm254, %v253
        %s256 = sand.u32 %s97, 1
        %s257 = scalar_lea.sflag [#allocation4], %s256
        %s258 = sand.u32 %s97, 1
        %s259 = smul.addr %s258, 4
        %s260 = scalar_lea.vmem [#allocation7], %s259
        // Predicated region
        $region41: #{tpu_custom_call.1} parent=31 // pred_check
          %p261 = pneg %p107
        $region42: #{tpu_custom_call.1} parent=31 // pred_check_branch
          %263 = sbr.rel (%p261) target = $region44
        $region43: #{tpu_custom_call.1} parent=31 // pred_region
          %265 = vsyncadd %s257, 0
          %s266 = smul.addr %s21, 4
          %s267 = scalar_lea.hbm %s3, %s266
          %s269 = sshll.u32 %s260, 4
          %s270 = int_to_ptr.vmem [resolvable:$true] %s269
          %s271 = sshll.u32 %s267, 4
          %s272 = int_to_ptr.hbm [resolvable:$true] %s271
          %274 = dma.vmem_to_hbm [thread:$0]  %s270, 64, %s272, %s257
        $region44: #{tpu_custom_call.1} parent=31 // pred_fallthru
          _
      $region32: #{tpu_custom_call.1} parent=5 // pred_fallthru
        _
      %p275 = scmp.le.s32.totalorder 2, %s16
      // Predicated region
      $region45: #{tpu_custom_call.1} parent=5 // pred_check
        %p276 = pneg %p275
      $region46: #{tpu_custom_call.1} parent=5 // pred_check_branch
        %278 = sbr.rel (%p276) target = $region48
      $region47: #{tpu_custom_call.1} parent=5 // pred_region
        %s279 = ssub.s32 %s16, 2
        // Predicated region
        $region49: #{tpu_custom_call.1} parent=47 // pred_check
          %p280 = pneg %p113
        $region50: #{tpu_custom_call.1} parent=47 // pred_check_branch
          %282 = sbr.rel (%p280) target = $region52
        $region51: #{tpu_custom_call.1} parent=47 // pred_region
          %s283 = sand.u32 %s98, 1
          %s284 = scalar_lea.sflag [#allocation4], %s283
          %s285 = sand.u32 %s98, 1
          %s286 = smul.addr %s285, 4
          %s287 = scalar_lea.vmem [#allocation7], %s286
          %289 = dma.done %s284, 64
        $region52: #{tpu_custom_call.1} parent=47 // pred_fallthru
          _
      $region48: #{tpu_custom_call.1} parent=5 // pred_fallthru
        _
    $region6: #{tpu_custom_call.1} parent=1 // loop_footer
      %s20 = sadd.s32 1, %s16
    $region7: #{tpu_custom_call.1} parent=1 // loop_footer_branch
      %15 = sbr.rel target = $region3
    $region8: #{tpu_custom_call.1} parent=1 // loop_exit
      _
    %290 = vsyncpa [#allocation3], 1
    %s291 = scalar_lea.sflag [#allocation3], 1
    %292 = vsyncpa %s291, 1
    %293 = vsyncpa [#allocation6], 1
    %294 = vsyncpa [#allocation4], 1
    %s295 = scalar_lea.sflag [#allocation4], 1
    %296 = vsyncpa %s295, 1

</llo_original>
